<compile_context>
chip_gen: v7x
topology: tpu7x:2x2x1
jax: 0.10.0
libtpu: 0.0.40
codegen_flags: <defaults>
</compile_context>

<pallas_src>
import functools

import jax
import jax.numpy as jnp
from jax.experimental import pallas as pl
from jax.experimental.pallas import tpu as pltpu


def _crop_offsets(h, w, th, tw):
    """(h_offset, w_offset) for [left_top, left_down, right_top, right_down, center]."""
    hc = (h - th) // 2
    wc = (w - tw) // 2
    return (
        (0, 0),
        (h - th, 0),
        (0, w - tw),
        (h - th, w - tw),
        (hc, wc),
    )


def _five_crop_kernel(x_ref, o_ref, *, offsets, th, tw):
    """Carve the five crop windows out of the staged VMEM slab.

    x_ref: (1, cb, H, W)      input block, staged in VMEM by the pipeline.
    o_ref: (5, 1, cb, th, tw) output block, written back to HBM by the pipeline.

    All offsets are static Python ints, so every slice is a static VMEM
    window read; the (possibly unaligned) lane/sublane shifts happen on-chip
    where there is no HBM-granule penalty.
    """
    for k, (h0, w0) in enumerate(offsets):
        o_ref[k, 0, :, :, :] = x_ref[0, :, h0:h0 + th, w0:w0 + tw]


def _xla_five_crop(video: jax.Array, size: tuple[int, int]) -> jax.Array:
    """Pure-XLA path (also the reference): plain slicing + concat."""
    th, tw = size
    _, _, h, w = video.shape
    crops = [video[:, :, h0:h0 + th, w0:w0 + tw]
             for (h0, w0) in _crop_offsets(h, w, th, tw)]
    return jnp.concatenate(crops, axis=0)


# Conservative budget so the double-buffered staging slab + output block fit
# the smallest scoped VMEM (v7x: 64 MiB physical, 32 MiB scoped default).
_VMEM_BUDGET_BYTES = 24 * 1024 * 1024
# Below this total-bytes threshold the fixed per-DMA latency dominates and
# XLA-fused slicing wins; keep tiny clips on the XLA path.
_XLA_FALLBACK_BYTES = 1 * 1024 * 1024


def five_video_crop(video: jax.Array, size: tuple[int, int], *,
                    force_pallas: bool = False) -> jax.Array:
    """Pallas equivalent of FiveVideoCrop(size)(video) for NCHW input.

    Returns (5*N, C, th, tw) with crops ordered
    [left_top, left_down, right_top, right_down, center].
    """
    th, tw = size
    n, c, h, w = video.shape
    if th > h or tw > w:
        raise ValueError(
            f"Requested crop size ({th}, {tw}) is larger than input "
            f"spatial size ({h}, {w}).")

    itemsize = jnp.dtype(video.dtype).itemsize
    in_bytes = n * c * h * w * itemsize
    out_bytes = 5 * n * c * th * tw * itemsize

    # Tiny inputs: let XLA fuse the static crops into the consumer instead of
    # paying fixed DMA-issue latency in a standalone copy kernel.
    if not force_pallas and (in_bytes + out_bytes) < _XLA_FALLBACK_BYTES:
        return _xla_five_crop(video, size)

    def vmem_estimate(cb):
        # Double-buffered input slab + double-buffered 5-crop output block.
        return 2 * cb * (h * w + 5 * th * tw) * itemsize

    # Largest channel-block size (divisor of C) that fits the VMEM budget.
    cb = None
    for cand in sorted((d for d in range(1, c + 1) if c % d == 0), reverse=True):
        if vmem_estimate(cand) <= _VMEM_BUDGET_BYTES:
            cb = cand
            break
    if cb is None:
        # Even a single (H, W) plane is too large to stage in VMEM.
        # TODO(synk): row-band staged double-buffered DMA kernel for planes
        # that exceed VMEM; fall back to XLA slicing for now.
        return _xla_five_crop(video, size)

    offsets = _crop_offsets(h, w, th, tw)
    kernel = functools.partial(_five_crop_kernel, offsets=offsets, th=th, tw=tw)

    # Output is produced as (5, N, C, th, tw) (crop-major) so each grid step
    # writes one dense block; the final reshape to (5*N, C, th, tw) merges
    # contiguous leading dims and is free.
    out5 = pl.pallas_call(
        kernel,
        out_shape=jax.ShapeDtypeStruct((5, n, c, th, tw), video.dtype),
        grid_spec=pltpu.PrefetchScalarGridSpec(
            num_scalar_prefetch=0,
            grid=(n, c // cb),
            in_specs=[
                # Full-width contiguous slab per (batch, channel-block):
                # last two block dims equal the full (H, W) extents.
                pl.BlockSpec((1, cb, h, w), lambda i, j: (i, j, 0, 0)),
            ],
            out_specs=pl.BlockSpec(
                (5, 1, cb, th, tw), lambda i, j: (0, i, j, 0, 0)),
        ),
        compiler_params=pltpu.CompilerParams(
            # No cross-step state: both axes parallel (megacore-shardable).
            dimension_semantics=("parallel", "parallel"),
            # Explicit limit: above the v5e 16 MiB scoped default, within the
            # 64 MiB physical VMEM of v7x.
            vmem_limit_bytes=32 * 1024 * 1024,
        ),
        # Pure DMA op: tell XLA its true byte cost so surrounding compute can
        # be overlapped with this custom call.
        cost_estimate=pl.CostEstimate(
            flops=0, transcendentals=0, bytes_accessed=in_bytes + out_bytes),
    )(video)

    return out5.reshape(5 * n, c, th, tw)


if __name__ == "__main__":
    key = jax.random.PRNGKey(0)

    # (shape, crop_size): small shapes, including unaligned crop offsets.
    tests = [
        ((2, 4, 16, 16), (8, 8)),
        ((2, 3, 24, 20), (16, 12)),
    ]
    for idx, (shape, size) in enumerate(tests):
        key, sub = jax.random.split(key)
        video = jax.random.normal(sub, shape, dtype=jnp.float32)

        out = jax.block_until_ready(
            five_video_crop(video, size, force_pallas=True))
        expected = _xla_five_crop(video, size)

        n, c = shape[:2]
        assert out.shape == (5 * n, c, size[0], size[1]), out.shape
        assert out.dtype == video.dtype
        assert jnp.array_equal(out, expected), f"mismatch vs reference (test {idx})"

    # Dispatch sanity check: tiny input routes to the fused XLA path.
    key, sub = jax.random.split(key)
    tiny = jax.random.normal(sub, (1, 3, 12, 12), dtype=jnp.float32)
    out_tiny = jax.block_until_ready(five_video_crop(tiny, (6, 6)))
    assert jnp.array_equal(out_tiny, _xla_five_crop(tiny, (6, 6)))

    print("KERNEL_OK")
</pallas_src>

<mosaic_0001>
module attributes {stable_mosaic.version = 11 : i64} {
  func.func @_five_crop_kernel(%arg0: i32, %arg1: i32, %arg2: memref<1x4x16x16xf32, #tpu.memory_space<vmem>>, %arg3: memref<5x1x4x8x8xf32, #tpu.memory_space<vmem>>) attributes {dimension_semantics = [#tpu.dimension_semantics<parallel>, #tpu.dimension_semantics<parallel>], iteration_bounds = array<i64: 2, 1>, scalar_prefetch = 0 : i64, scratch_operands = 0 : i64, tpu.core_type = #tpu.core_type<tc>, window_params = [{transform_indices = @transform_0, window_bounds = array<i64: 1, 4, 16, 16>}, {transform_indices = @transform_1, window_bounds = array<i64: 5, 1, 4, 8, 8>}]} {
    %c0 = arith.constant 0 : index
    %c0_0 = arith.constant 0 : index
    %c0_1 = arith.constant 0 : index
    %c0_2 = arith.constant 0 : index
    %0 = vector.load %arg2[%c0, %c0_0, %c0_1, %c0_2] : memref<1x4x16x16xf32, #tpu.memory_space<vmem>>, vector<1x4x8x8xf32>
    %1 = vector.shape_cast %0 : vector<1x4x8x8xf32> to vector<4x8x8xf32>
    %c0_3 = arith.constant 0 : index
    %c0_4 = arith.constant 0 : index
    %c0_5 = arith.constant 0 : index
    %c0_6 = arith.constant 0 : index
    %c0_7 = arith.constant 0 : index
    %2 = vector.load %arg3[%c0_3, %c0_4, %c0_5, %c0_6, %c0_7] : memref<5x1x4x8x8xf32, #tpu.memory_space<vmem>>, vector<1x1x4x8x8xf32>
    %3 = vector.shape_cast %2 : vector<1x1x4x8x8xf32> to vector<4x8x8xf32>
    %4 = vector.shape_cast %1 : vector<4x8x8xf32> to vector<1x1x4x8x8xf32>
    tpu.vector_store %arg3[%c0_3, %c0_4, %c0_5, %c0_6, %c0_7], %4 {strides = array<i32>} : memref<5x1x4x8x8xf32, #tpu.memory_space<vmem>>, vector<1x1x4x8x8xf32>,
    %c0_8 = arith.constant 0 : index
    %c0_9 = arith.constant 0 : index
    %c8 = arith.constant 8 : index
    %c0_10 = arith.constant 0 : index
    %5 = vector.load %arg2[%c0_8, %c0_9, %c8, %c0_10] : memref<1x4x16x16xf32, #tpu.memory_space<vmem>>, vector<1x4x8x8xf32>
    %6 = vector.shape_cast %5 : vector<1x4x8x8xf32> to vector<4x8x8xf32>
    %c1 = arith.constant 1 : index
    %c0_11 = arith.constant 0 : index
    %c0_12 = arith.constant 0 : index
    %c0_13 = arith.constant 0 : index
    %c0_14 = arith.constant 0 : index
    %7 = vector.load %arg3[%c1, %c0_11, %c0_12, %c0_13, %c0_14] : memref<5x1x4x8x8xf32, #tpu.memory_space<vmem>>, vector<1x1x4x8x8xf32>
    %8 = vector.shape_cast %7 : vector<1x1x4x8x8xf32> to vector<4x8x8xf32>
    %9 = vector.shape_cast %6 : vector<4x8x8xf32> to vector<1x1x4x8x8xf32>
    tpu.vector_store %arg3[%c1, %c0_11, %c0_12, %c0_13, %c0_14], %9 {strides = array<i32>} : memref<5x1x4x8x8xf32, #tpu.memory_space<vmem>>, vector<1x1x4x8x8xf32>,
    %c0_15 = arith.constant 0 : index
    %c0_16 = arith.constant 0 : index
    %c0_17 = arith.constant 0 : index
    %c8_18 = arith.constant 8 : index
    %10 = vector.load %arg2[%c0_15, %c0_16, %c0_17, %c8_18] : memref<1x4x16x16xf32, #tpu.memory_space<vmem>>, vector<1x4x8x8xf32>
    %11 = vector.shape_cast %10 : vector<1x4x8x8xf32> to vector<4x8x8xf32>
    %c2 = arith.constant 2 : index
    %c0_19 = arith.constant 0 : index
    %c0_20 = arith.constant 0 : index
    %c0_21 = arith.constant 0 : index
    %c0_22 = arith.constant 0 : index
    %12 = vector.load %arg3[%c2, %c0_19, %c0_20, %c0_21, %c0_22] : memref<5x1x4x8x8xf32, #tpu.memory_space<vmem>>, vector<1x1x4x8x8xf32>
    %13 = vector.shape_cast %12 : vector<1x1x4x8x8xf32> to vector<4x8x8xf32>
    %14 = vector.shape_cast %11 : vector<4x8x8xf32> to vector<1x1x4x8x8xf32>
    tpu.vector_store %arg3[%c2, %c0_19, %c0_20, %c0_21, %c0_22], %14 {strides = array<i32>} : memref<5x1x4x8x8xf32, #tpu.memory_space<vmem>>, vector<1x1x4x8x8xf32>,
    %c0_23 = arith.constant 0 : index
    %c0_24 = arith.constant 0 : index
    %c8_25 = arith.constant 8 : index
    %c8_26 = arith.constant 8 : index
    %15 = vector.load %arg2[%c0_23, %c0_24, %c8_25, %c8_26] : memref<1x4x16x16xf32, #tpu.memory_space<vmem>>, vector<1x4x8x8xf32>
    %16 = vector.shape_cast %15 : vector<1x4x8x8xf32> to vector<4x8x8xf32>
    %c3 = arith.constant 3 : index
    %c0_27 = arith.constant 0 : index
    %c0_28 = arith.constant 0 : index
    %c0_29 = arith.constant 0 : index
    %c0_30 = arith.constant 0 : index
    %17 = vector.load %arg3[%c3, %c0_27, %c0_28, %c0_29, %c0_30] : memref<5x1x4x8x8xf32, #tpu.memory_space<vmem>>, vector<1x1x4x8x8xf32>
    %18 = vector.shape_cast %17 : vector<1x1x4x8x8xf32> to vector<4x8x8xf32>
    %19 = vector.shape_cast %16 : vector<4x8x8xf32> to vector<1x1x4x8x8xf32>
    tpu.vector_store %arg3[%c3, %c0_27, %c0_28, %c0_29, %c0_30], %19 {strides = array<i32>} : memref<5x1x4x8x8xf32, #tpu.memory_space<vmem>>, vector<1x1x4x8x8xf32>,
    %c0_31 = arith.constant 0 : index
    %c0_32 = arith.constant 0 : index
    %c4 = arith.constant 4 : index
    %c4_33 = arith.constant 4 : index
    %20 = vector.load %arg2[%c0_31, %c0_32, %c4, %c4_33] : memref<1x4x16x16xf32, #tpu.memory_space<vmem>>, vector<1x4x8x8xf32>
    %21 = vector.shape_cast %20 : vector<1x4x8x8xf32> to vector<4x8x8xf32>
    %c4_34 = arith.constant 4 : index
    %c0_35 = arith.constant 0 : index
    %c0_36 = arith.constant 0 : index
    %c0_37 = arith.constant 0 : index
    %c0_38 = arith.constant 0 : index
    %22 = vector.load %arg3[%c4_34, %c0_35, %c0_36, %c0_37, %c0_38] : memref<5x1x4x8x8xf32, #tpu.memory_space<vmem>>, vector<1x1x4x8x8xf32>
    %23 = vector.shape_cast %22 : vector<1x1x4x8x8xf32> to vector<4x8x8xf32>
    %24 = vector.shape_cast %21 : vector<4x8x8xf32> to vector<1x1x4x8x8xf32>
    tpu.vector_store %arg3[%c4_34, %c0_35, %c0_36, %c0_37, %c0_38], %24 {strides = array<i32>} : memref<5x1x4x8x8xf32, #tpu.memory_space<vmem>>, vector<1x1x4x8x8xf32>,
    return
  }
  func.func @transform_0(%arg0: i32, %arg1: i32) -> (i32, i32, i32, i32) {
    %c0_i32 = arith.constant 0 : i32
    %c0_i32_0 = arith.constant 0 : i32
    %c0_i32_1 = arith.constant 0 : i32
    return %arg0, %arg1, %c0_i32, %c0_i32_0 : i32, i32, i32, i32
  }
  func.func @transform_1(%arg0: i32, %arg1: i32) -> (i32, i32, i32, i32, i32) {
    %c0_i32 = arith.constant 0 : i32
    %c0_i32_0 = arith.constant 0 : i32
    %c0_i32_1 = arith.constant 0 : i32
    %c0_i32_2 = arith.constant 0 : i32
    return %c0_i32, %arg0, %arg1, %c0_i32_0, %c0_i32_1 : i32, i32, i32, i32, i32
  }
}

</mosaic_0001>

<llo_original>
// kernel: tpu_custom_call.1
$region0: #{tpu_custom_call.1}
  #allocation0 [shape = 'u32[]', space=smem, size = 0x4, offset = 0x4, fixed_abs, tag = 'smem constant byte address 0x4 - core index']
  #allocation1 [shape = 'u32[144,128]{1,0:T(1,128)}', space=vmem, size = 0x12000, scoped, tag = 'internal scratch']
  #allocation6 [shape = 's32[]', space=sflag, size = 0x4, offset = 0, fixed_abs, tag = 'sflag constant byte address 0x0 - dummy sync flag']
  %s0 = inlined_call_operand.hbm [shape: f32[2,4,16,16], index: 0, kind: input, shape index: {}]
  %s1 = inlined_call_operand.hbm [shape: f32[5,2,4,8,8], index: 1, kind: output, shape index: {}]
  %s2 = sld [smem:[#allocation0]]
  $region41: #{tpu_custom_call.1} parent=0
    _
  %s4 = ssub.s32 1, %s2
  %s5 = scalar_select 0, %s4, %s2
  $region1: #{tpu_custom_call.1} parent=0
    #allocation2 [shape = 'u8[65536]{0}', space=vmem, size = 0x10000, scoped, tag = 'input window, operand 0']
    #allocation3 [shape = 's32[2]{0}', space=sflag, size = 0x8, scoped, tag = 'scoped memory for tpu_custom_call.1']
    #allocation4 [shape = 's32[2]{0}', space=sflag, size = 0x8, scoped, tag = 'scoped memory for tpu_custom_call.1']
    #allocation5 [shape = 'u8[163840]{0}', space=vmem, size = 0x28000, scoped, tag = 'output window, operand 0']
    %6 = vsyncpa [#allocation3], 0
    %s7 = scalar_lea.sflag [#allocation3], 1
    %8 = vsyncpa %s7, 0
    %9 = vsyncpa [#allocation4], 0
    %s10 = scalar_lea.sflag [#allocation4], 1
    %11 = vsyncpa %s10, 0
    loop: start=0, step=1, limit=4
    $region2: #{tpu_custom_call.1} parent=1 // loop_pre_header
      _
    $region3: #{tpu_custom_call.1} parent=1 // loop_header
      %s13 = sphi 0, %s17
      %p14 = scmp.ge.s32.totalorder %s13, 4
      %s20 = sphi 0, %s32
      %s21 = sphi 0, %s28
      %s22 = sphi 0, %s20
      %s23 = sphi 0, %s21
      %s24 = sphi 0, %s22
      %s25 = sphi 0, %s23
      %s37 = sphi 0, %s39
      %s40 = sphi 0, %s37
      %s41 = sphi 0, %s40
      %s57 = sphi 0, %s41
      %s65 = sphi 0, %s67
      %s68 = sphi 0, %s65
      %s69 = sphi 0, %s68
      %s85 = sphi 0, %s69
    $region4: #{tpu_custom_call.1} parent=1 // loop_header_branch
      %16 = sbr.rel (%p14) target = $region8
    $region5: #{tpu_custom_call.1} parent=1 // loop_body
      %s18 = ssub.s32 %s13, 1
      %s19 = ssub.s32 %s13, 2
      %s26 = sadd.s32 1, %s21
      %p27 = scmp.ge.s32.totalorder %s26, 1
      %s28 = scalar_select %p27, 0, %s26
      %s29 = sadd.s32 1, %s20
      %s30 = scalar_select %p27, %s29, %s20
      %p31 = scmp.ge.s32.totalorder %s30, 2
      %s32 = scalar_select %p31, 0, %s30
      %s33 = ssub.s32 %s20, %s32
      %s34 = ssub.s32 %s21, %s28
      %s35 = sor.u32 %s33, %s34
      %p36 = scmp.eq.s32.totalorder %s35, 0
      %s38 = sadd.s32 %s37, 1
      %s39 = scalar_select %p36, %s37, %s38
      %p42 = pneg %p36
      %p43 = scmp.eq.s32.totalorder %s13, 1
      %p44 = por %p42, %p43
      %p45 = scmp.ne.s32.totalorder %s37, %s40
      %p46 = scmp.eq.s32.totalorder %s13, 0
      %p47 = por %p45, %p46
      %p48 = scmp.ne.s32.totalorder %s37, %s40
      %p49 = scmp.eq.s32.totalorder %s18, 1
      %p50 = por %p48, %p49
      %p51 = scmp.ne.s32.totalorder %s40, %s41
      %p52 = scmp.eq.s32.totalorder %s18, 0
      %p53 = por %p51, %p52
      %p54 = scmp.ne.s32.totalorder %s40, %s41
      %p55 = scmp.eq.s32.totalorder %s19, 1
      %p56 = por %p54, %p55
      %p58 = scmp.ne.s32.totalorder %s41, %s57
      %p59 = scmp.eq.s32.totalorder %s19, 0
      %p60 = por %p58, %p59
      %s61 = ssub.s32 %s20, %s32
      %s62 = ssub.s32 %s21, %s28
      %s63 = sor.u32 %s61, %s62
      %p64 = scmp.eq.s32.totalorder %s63, 0
      %s66 = sadd.s32 %s65, 1
      %s67 = scalar_select %p64, %s65, %s66
      %p70 = pneg %p64
      %p71 = scmp.eq.s32.totalorder %s13, 1
      %p72 = por %p70, %p71
      %p73 = scmp.ne.s32.totalorder %s65, %s68
      %p74 = scmp.eq.s32.totalorder %s13, 0
      %p75 = por %p73, %p74
      %p76 = scmp.ne.s32.totalorder %s65, %s68
      %p77 = scmp.eq.s32.totalorder %s18, 1
      %p78 = por %p76, %p77
      %p79 = scmp.ne.s32.totalorder %s68, %s69
      %p80 = scmp.eq.s32.totalorder %s18, 0
      %p81 = por %p79, %p80
      %p82 = scmp.ne.s32.totalorder %s68, %s69
      %p83 = scmp.eq.s32.totalorder %s19, 1
      %p84 = por %p82, %p83
      %p86 = scmp.ne.s32.totalorder %s69, %s85
      %p87 = scmp.eq.s32.totalorder %s19, 0
      %p88 = por %p86, %p87
      %p89 = scmp.le.s32.totalorder 1, %s13
      %p90 = scmp.lt.s32.totalorder %s13, 3
      %p91 = pnand %p89, %p90
      %p92 = pneg %p91
      // Predicated region
      $region9: #{tpu_custom_call.1} parent=5 // pred_check
        _
      $region10: #{tpu_custom_call.1} parent=5 // pred_check_branch
        %94 = sbr.rel (%p91) target = $region12
      $region11: #{tpu_custom_call.1} parent=5 // pred_region
        %s95 = ssub.s32 %s13, 1
      $region12: #{tpu_custom_call.1} parent=5 // pred_fallthru
        _
      %p96 = scmp.lt.s32.totalorder %s13, 2
      // Predicated region
      $region13: #{tpu_custom_call.1} parent=5 // pred_check
        %p97 = pneg %p96
      $region14: #{tpu_custom_call.1} parent=5 // pred_check_branch
        %99 = sbr.rel (%p97) target = $region16
      $region15: #{tpu_custom_call.1} parent=5 // pred_region
        // Predicated region
        $region17: #{tpu_custom_call.1} parent=15 // pred_check
          %p100 = pneg %p47
        $region18: #{tpu_custom_call.1} parent=15 // pred_check_branch
          %102 = sbr.rel (%p100) target = $region20
        $region19: #{tpu_custom_call.1} parent=15 // pred_region
          %s103 = sand.u32 %s37, 1
          %s104 = scalar_lea.sflag [#allocation3], %s103
          %s105 = sand.u32 %s37, 1
          %s106 = smul.addr %s105, 64
          %s107 = scalar_lea.vmem [#allocation2], %s106
          %s108 = smul.u32 4, %s21
          %s110 = ssub.s32 1024, 1024
          %111 = vsyncadd %s104, %s110
          %s112 = smul.addr %s108, 2
          %s113 = smul.addr %s20, 8
          %s114 = sadd.s32 %s112, %s113
          %s115 = smul.addr %s114, 128
          %s116 = scalar_lea.hbm %s0, %s115
          %s117 = sshll.u32 %s107, 4
          %s118 = int_to_ptr.vmem [resolvable:$true] %s117
          %123 = dma.hbm_to_vmem [thread:$0]  %s116, 1024, %s118, %s104, 128, 128, 8
        $region20: #{tpu_custom_call.1} parent=15 // pred_fallthru
          _
      $region16: #{tpu_custom_call.1} parent=5 // pred_fallthru
        _
      %p124 = scmp.le.s32.totalorder 1, %s13
      %p125 = scmp.lt.s32.totalorder %s13, 3
      %p126 = pnand %p124, %p125
      %p127 = pneg %p126
      // Predicated region
      $region21: #{tpu_custom_call.1} parent=5 // pred_check
        _
      $region22: #{tpu_custom_call.1} parent=5 // pred_check_branch
        %129 = sbr.rel (%p126) target = $region24
      $region23: #{tpu_custom_call.1} parent=5 // pred_region
        %s130 = ssub.s32 %s13, 1
        %s131 = sand.u32 %s40, 1
        %s132 = scalar_lea.sflag [#allocation3], %s131
        %s133 = sand.u32 %s40, 1
        %s134 = smul.addr %s133, 64
        %s135 = scalar_lea.vmem [#allocation2], %s134
        // Predicated region
        $region25: #{tpu_custom_call.1} parent=23 // pred_check
          %p136 = pneg %p53
        $region26: #{tpu_custom_call.1} parent=23 // pred_check_branch
          %138 = sbr.rel (%p136) target = $region28
        $region27: #{tpu_custom_call.1} parent=23 // pred_region
          %139 = dma.done %s132, 1024
        $region28: #{tpu_custom_call.1} parent=23 // pred_fallthru
          _
        %s140 = sand.u32 %s40, 1
        %s141 = scalar_lea.sflag [#allocation3], %s140
        %s142 = sand.u32 %s40, 1
        %s143 = smul.addr %s142, 64
        %s144 = scalar_lea.vmem [#allocation2], %s143
        %p145 = pneg %p53
        %p146 = pneg %p50
        %p147 = pneg %p81
        %p148 = pneg %p78
        %s149 = sand.u32 %s68, 1
        %s150 = scalar_lea.sflag [#allocation4], %s149
        %s151 = sand.u32 %s68, 1
        %s152 = smul.addr %s151, 160
        %s153 = scalar_lea.vmem [#allocation5], %s152
        %s154 = smul.u32 4, %s23
        %s155 = smul.u32 4, %s23
        %v156 = vld [vmem:[%s135] sm:$0xff]
        %v157 = vld [vmem:[%s135 + $0x10] sm:$0xff]
        %v158 = vld [vmem:[%s135 + $0x20] sm:$0xff]
        %v159 = vld [vmem:[%s135 + $0x30] sm:$0xff]
        %vm160 = vcmask 64512
        %161 = vst.msk [vmem:[%s153] sm:$0xff] %vm160, %v156
        %162 = vst.msk [vmem:[%s153 + $0x8] sm:$0xff] %vm160, %v157
        %163 = vst.msk [vmem:[%s153 + $0x10] sm:$0xff] %vm160, %v158
        %164 = vst.msk [vmem:[%s153 + $0x18] sm:$0xff] %vm160, %v159
        %v165 = vld [vmem:[%s135 + $0x8] sm:$0xff]
        %v166 = vld [vmem:[%s135 + $0x18] sm:$0xff]
        %v167 = vld [vmem:[%s135 + $0x28] sm:$0xff]
        %v168 = vld [vmem:[%s135 + $0x38] sm:$0xff]
        %s169 = scalar_lea.vmem %s153, 32 [#allocation5]
        %170 = vst.msk [vmem:[%s169] sm:$0xff] %vm160, %v165
        %171 = vst.msk [vmem:[%s169 + $0x8] sm:$0xff] %vm160, %v166
        %172 = vst.msk [vmem:[%s169 + $0x10] sm:$0xff] %vm160, %v167
        %173 = vst.msk [vmem:[%s169 + $0x18] sm:$0xff] %vm160, %v168
        %v174 = vld [vmem:[%s135] sm:$0xff]
        %v175 = vld [vmem:[%s135 + $0x10] sm:$0xff]
        %v176 = vld [vmem:[%s135 + $0x20] sm:$0xff]
        %v177 = vld [vmem:[%s135 + $0x30] sm:$0xff]
        %182 = vrot.lane.b32.xlu0 %v174, 120
        %v183 = vpop.permute.xlu0 %182
        %184 = vrot.lane.b32.xlu0 %v175, 120
        %v185 = vpop.permute.xlu0 %184
        %186 = vrot.lane.b32.xlu0 %v176, 120
        %v187 = vpop.permute.xlu0 %186
        %188 = vrot.lane.b32.xlu0 %v177, 120
        %v189 = vpop.permute.xlu0 %188
        %s194 = scalar_lea.vmem %s153, 64 [#allocation5]
        %195 = vst.msk [vmem:[%s194] sm:$0xff] %vm160, %v183
        %196 = vst.msk [vmem:[%s194 + $0x8] sm:$0xff] %vm160, %v185
        %197 = vst.msk [vmem:[%s194 + $0x10] sm:$0xff] %vm160, %v187
        %198 = vst.msk [vmem:[%s194 + $0x18] sm:$0xff] %vm160, %v189
        %v199 = vld [vmem:[%s135 + $0x8] sm:$0xff]
        %v200 = vld [vmem:[%s135 + $0x18] sm:$0xff]
        %v201 = vld [vmem:[%s135 + $0x28] sm:$0xff]
        %v202 = vld [vmem:[%s135 + $0x38] sm:$0xff]
        %207 = vrot.lane.b32.xlu0 %v199, 120
        %v208 = vpop.permute.xlu0 %207
        %209 = vrot.lane.b32.xlu0 %v200, 120
        %v210 = vpop.permute.xlu0 %209
        %211 = vrot.lane.b32.xlu0 %v201, 120
        %v212 = vpop.permute.xlu0 %211
        %213 = vrot.lane.b32.xlu0 %v202, 120
        %v214 = vpop.permute.xlu0 %213
        %s219 = scalar_lea.vmem %s153, 96 [#allocation5]
        %220 = vst.msk [vmem:[%s219] sm:$0xff] %vm160, %v208
        %221 = vst.msk [vmem:[%s219 + $0x8] sm:$0xff] %vm160, %v210
        %222 = vst.msk [vmem:[%s219 + $0x10] sm:$0xff] %vm160, %v212
        %223 = vst.msk [vmem:[%s219 + $0x18] sm:$0xff] %vm160, %v214
        %v224 = vld [vmem:[%s135 + $0x4] sm:$0xff]
        %v225 = vld [vmem:[%s135 + $0x14] sm:$0xff]
        %v226 = vld [vmem:[%s135 + $0x24] sm:$0xff]
        %v227 = vld [vmem:[%s135 + $0x34] sm:$0xff]
        %232 = vrot.lane.b32.xlu0 %v224, 124
        %v233 = vpop.permute.xlu0 %232
        %234 = vrot.lane.b32.xlu0 %v225, 124
        %v235 = vpop.permute.xlu0 %234
        %236 = vrot.lane.b32.xlu0 %v226, 124
        %v237 = vpop.permute.xlu0 %236
        %238 = vrot.lane.b32.xlu0 %v227, 124
        %v239 = vpop.permute.xlu0 %238
        %s244 = scalar_lea.vmem %s153, 128 [#allocation5]
        %245 = vst.msk [vmem:[%s244] sm:$0xff] %vm160, %v233
        %246 = vst.msk [vmem:[%s244 + $0x8] sm:$0xff] %vm160, %v235
        %247 = vst.msk [vmem:[%s244 + $0x10] sm:$0xff] %vm160, %v237
        %248 = vst.msk [vmem:[%s244 + $0x18] sm:$0xff] %vm160, %v239
        %s249 = sand.u32 %s68, 1
        %s250 = scalar_lea.sflag [#allocation4], %s249
        %s251 = sand.u32 %s68, 1
        %s252 = smul.addr %s251, 160
        %s253 = scalar_lea.vmem [#allocation5], %s252
        // Predicated region
        $region29: #{tpu_custom_call.1} parent=23 // pred_check
          %p254 = pneg %p78
        $region30: #{tpu_custom_call.1} parent=23 // pred_check_branch
          %256 = sbr.rel (%p254) target = $region32
        $region31: #{tpu_custom_call.1} parent=23 // pred_region
          #allocation7 [shape = 'u32[6]{0}', space=smem, size = 0x18, scoped, tag = 'DMA stride descriptor']
          %s257 = smul.u32 4, %s23
          %s259 = ssub.s32 2560, 2560
          %260 = vsyncadd %s250, %s259
          %s261 = smul.addr %s22, 4
          %s262 = sadd.s32 %s257, %s261
          %s263 = smul.addr %s262, 128
          %s264 = scalar_lea.hbm %s1, %s263
          %s266 = sshll.u32 1, 14
          %s267 = sxor.u32 4294967295, %s266
          %s270 = sshll.u32 7, 18
          %s271 = sxor.u32 4294967295, %s270
          %s272 = sand.u32 0, %s271
          %s274 = sor.u32 %s272, 0
          %s276 = sshll.u32 3, 24
          %s277 = sxor.u32 4294967295, %s276
          %s278 = sand.u32 %s274, %s277
          %s280 = sor.u32 %s278, 0
          %s281 = sshll.u32 %s253, 4
          %s282 = int_to_ptr.vmem [resolvable:$true] %s281
          %288 = sst [smem:[#allocation7]] 512
          %s289 = scalar_lea.smem [#allocation7], 1
          %290 = sst [smem:[%s289]] 1024
          %s291 = scalar_lea.smem [#allocation7], 2
          %292 = sst [smem:[%s291]] 4
          %s293 = scalar_lea.smem [#allocation7], 3
          %294 = sst [smem:[%s293]] 128
          %s295 = scalar_lea.smem [#allocation7], 4
          %296 = sst [smem:[%s295]] 128
          %s297 = scalar_lea.smem [#allocation7], 5
          %298 = sst [smem:[%s297]] 8
          %300 = dma.general %s282, 2560, %s264, %s250, [#allocation6], [#allocation7], %s280, 0
        $region32: #{tpu_custom_call.1} parent=23 // pred_fallthru
          _
      $region24: #{tpu_custom_call.1} parent=5 // pred_fallthru
        _
      %p301 = scmp.le.s32.totalorder 2, %s13
      // Predicated region
      $region33: #{tpu_custom_call.1} parent=5 // pred_check
        %p302 = pneg %p301
      $region34: #{tpu_custom_call.1} parent=5 // pred_check_branch
        %304 = sbr.rel (%p302) target = $region36
      $region35: #{tpu_custom_call.1} parent=5 // pred_region
        %s305 = ssub.s32 %s13, 2
        // Predicated region
        $region37: #{tpu_custom_call.1} parent=35 // pred_check
          %p306 = pneg %p84
        $region38: #{tpu_custom_call.1} parent=35 // pred_check_branch
          %308 = sbr.rel (%p306) target = $region40
        $region39: #{tpu_custom_call.1} parent=35 // pred_region
          %s309 = sand.u32 %s69, 1
          %s310 = scalar_lea.sflag [#allocation4], %s309
          %s311 = sand.u32 %s69, 1
          %s312 = smul.addr %s311, 160
          %s313 = scalar_lea.vmem [#allocation5], %s312
          %314 = dma.done %s310, 2560
        $region40: #{tpu_custom_call.1} parent=35 // pred_fallthru
          _
      $region36: #{tpu_custom_call.1} parent=5 // pred_fallthru
        _
    $region6: #{tpu_custom_call.1} parent=1 // loop_footer
      %s17 = sadd.s32 1, %s13
    $region7: #{tpu_custom_call.1} parent=1 // loop_footer_branch
      %12 = sbr.rel target = $region3
    $region8: #{tpu_custom_call.1} parent=1 // loop_exit
      _
    %315 = vsyncpa [#allocation3], 1
    %s316 = scalar_lea.sflag [#allocation3], 1
    %317 = vsyncpa %s316, 1
    %318 = vsyncpa [#allocation4], 1
    %s319 = scalar_lea.sflag [#allocation4], 1
    %320 = vsyncpa %s319, 1

</llo_original>
